<compile_context>
chip_gen: v7x
topology: tpu7x:2x2x1
jax: 0.10.0
libtpu: 0.0.40
codegen_flags: <defaults>
</compile_context>

<pallas_src>
import jax
import jax.numpy as jnp
from jax.experimental import pallas as pl
from jax.experimental.pallas import tpu as pltpu


def _plan_dmas(batch: int, out_len: int, target_dmas: int):
    """Static plan: list of (b0, nb, s0, ns) windows covering (batch, out_len).

    Each entry becomes one DMA copying rows [s0, s0+ns) of the cropped window for
    batches [b0, b0+nb).  Aims for ~`target_dmas` concurrent DMAs.
    """
    plans = []
    if batch >= target_dmas:
        # Few DMAs needed per batch: group batches, one 3-D strided copy each.
        per = -(-batch // target_dmas)  # ceil
        b0 = 0
        while b0 < batch:
            nb = min(per, batch - b0)
            plans.append((b0, nb, 0, out_len))
            b0 += nb
    else:
        # Split each batch's window into sequence chunks (8-row aligned).
        chunks = max(1, target_dmas // batch)
        step = -(-out_len // chunks)            # ceil
        step = max(8, ((step + 7) // 8) * 8)    # sublane-friendly
        for b in range(batch):
            s0 = 0
            while s0 < out_len:
                ns = min(step, out_len - s0)
                plans.append((b, 1, s0, ns))
                s0 += ns
    return plans


def _make_crop_kernel(start: int, plans):
    """Kernel: issue all HBM->HBM DMAs for the cropped window, then wait on all.

    `start` (first kept row) and every entry of `plans` are static Python ints,
    so every DMA has static offsets/sizes.
    """

    def kernel(x_hbm, out_hbm, sems):
        copies = []
        for i, (b0, nb, s0, ns) in enumerate(plans):
            cp = pltpu.make_async_copy(
                x_hbm.at[pl.ds(b0, nb), pl.ds(start + s0, ns), :],
                out_hbm.at[pl.ds(b0, nb), pl.ds(s0, ns), :],
                sems.at[i],
            )
            cp.start()
            copies.append(cp)
        for cp in copies:          # wait only after every DMA is in flight
            cp.wait()

    return kernel


def target_length_crop(x: jnp.ndarray, target_length: int, *, target_dmas: int = 8):
    """Pallas implementation of TargetLengthCrop.forward for a (B, S, D) input."""
    if x.ndim != 3:
        raise ValueError(f"expected (batch, seq, features) input, got shape {x.shape}")
    B, S, D = x.shape
    seq_len = S

    if target_length == -1:
        return x
    if seq_len < target_length:
        raise ValueError(
            f"sequence length {seq_len} is less than target length {target_length}"
        )

    trim = (target_length - seq_len) // 2   # Python floor div, matches PyTorch
    if trim == 0:
        return x

    start = -trim                   # rows cropped off the front
    out_len = seq_len + 2 * trim    # == len(x[:, -trim:trim]) along the seq axis

    plans = _plan_dmas(B, out_len, max(1, target_dmas))
    kernel = _make_crop_kernel(start, plans)

    return pl.pallas_call(
        kernel,
        out_shape=jax.ShapeDtypeStruct((B, out_len, D), x.dtype),
        in_specs=[
            # Raw HBM ref: only the cropped window's bytes ever move.
            pl.BlockSpec(memory_space=pl.ANY),
        ],
        out_specs=pl.BlockSpec(memory_space=pl.ANY),
        scratch_shapes=[pltpu.SemaphoreType.DMA((len(plans),))],
    )(x)


if __name__ == "__main__":
    key = jax.random.PRNGKey(0)

    # Test 1: B=2, S=16, D=128, target_length=12
    # trim = (12-16)//2 = -2 -> output = x[:, 2:-2, :] with shape (2, 12, 128)
    B, S, D = 2, 16, 128
    target_length = 12
    x = jax.random.normal(key, (B, S, D), dtype=jnp.float32)

    y = jax.block_until_ready(target_length_crop(x, target_length))
    trim = (target_length - S) // 2
    y_ref = x[:, -trim:trim, :]
    assert y.shape == y_ref.shape, (y.shape, y_ref.shape)
    assert jnp.array_equal(y, y_ref), "Pallas crop does not match reference slice"

    # Test 2: multi-chunk + remainder path.
    # S=40, target=26 -> trim=-7, out_len=26, start=7; per-batch chunks of 8 rows
    # + a 2-row tail -> 8 concurrent DMAs.
    B2, S2, D2 = 2, 40, 128
    target2 = 26
    x2 = jax.random.normal(jax.random.PRNGKey(0), (B2, S2, D2), dtype=jnp.float32)
    y2 = jax.block_until_ready(target_length_crop(x2, target2))
    trim2 = (target2 - S2) // 2
    y2_ref = x2[:, -trim2:trim2, :]
    assert y2.shape == y2_ref.shape, (y2.shape, y2_ref.shape)
    assert jnp.array_equal(y2, y2_ref), "Chunked-DMA path mismatch"

    # Test 3: batch-grouped 3-D strided DMA path (forced with target_dmas=2):
    # B=4 >= 2 -> 2 DMAs, each copying a (2, out_len, D) strided window.
    B3, S3, D3 = 4, 24, 128
    target3 = 18
    x3 = jax.random.normal(jax.random.PRNGKey(0), (B3, S3, D3), dtype=jnp.float32)
    y3 = jax.block_until_ready(target_length_crop(x3, target3, target_dmas=2))
    trim3 = (target3 - S3) // 2
    y3_ref = x3[:, -trim3:trim3, :]
    assert y3.shape == y3_ref.shape, (y3.shape, y3_ref.shape)
    assert jnp.array_equal(y3, y3_ref), "Batch-grouped strided DMA path mismatch"

    # Pass-through paths (match the PyTorch module: return input unchanged).
    assert target_length_crop(x, -1) is x
    assert target_length_crop(x, S) is x

    print("KERNEL_OK")
</pallas_src>

<mosaic_0001>
module attributes {stable_mosaic.version = 11 : i64} {
  func.func @kernel(%arg0: memref<2x16x128xf32, #tpu.memory_space<any>>, %arg1: memref<2x12x128xf32, #tpu.memory_space<any>>, %arg2: memref<4x!tpu.dma_semaphore, #tpu.memory_space<semaphore_mem>>) attributes {dimension_semantics = [], scalar_prefetch = 0 : i64, scratch_operands = 1 : i64, tpu.core_type = #tpu.core_type<tc>} {
    %c0_i32 = arith.constant 0 : i32
    %c0_i32_0 = arith.constant 0 : i32
    %c2_i32 = arith.constant 2 : i32
    %c0_i32_1 = arith.constant 0 : i32
    %0 = tpu.memref_slice %arg0[%c0_i32_0, %c2_i32, %c0_i32_1] : memref<2x16x128xf32, #tpu.memory_space<any>> -> memref<1x8x128xf32, #tpu.memory_space<any>>
    %c0_i32_2 = arith.constant 0 : i32
    %c0_i32_3 = arith.constant 0 : i32
    %c0_i32_4 = arith.constant 0 : i32
    %1 = tpu.memref_slice %arg1[%c0_i32_2, %c0_i32_3, %c0_i32_4] : memref<2x12x128xf32, #tpu.memory_space<any>> -> memref<1x8x128xf32, #tpu.memory_space<any>>
    %2 = tpu.memref_slice %arg2[%c0_i32] : memref<4x!tpu.dma_semaphore, #tpu.memory_space<semaphore_mem>> -> memref<1x!tpu.dma_semaphore, #tpu.memory_space<semaphore_mem>>
    %3 = tpu.memref_squeeze %2 : memref<1x!tpu.dma_semaphore, #tpu.memory_space<semaphore_mem>> -> memref<!tpu.dma_semaphore, #tpu.memory_space<semaphore_mem>>
    tpu.enqueue_dma source(%0 : memref<1x8x128xf32, #tpu.memory_space<any>>) target(%1 : memref<1x8x128xf32, #tpu.memory_space<any>>) target_semaphore(%3 : memref<!tpu.dma_semaphore, #tpu.memory_space<semaphore_mem>>)
    %c1_i32 = arith.constant 1 : i32
    %c0_i32_5 = arith.constant 0 : i32
    %c10_i32 = arith.constant 10 : i32
    %c0_i32_6 = arith.constant 0 : i32
    %4 = tpu.memref_slice %arg0[%c0_i32_5, %c10_i32, %c0_i32_6] : memref<2x16x128xf32, #tpu.memory_space<any>> -> memref<1x4x128xf32, #tpu.memory_space<any>>
    %c0_i32_7 = arith.constant 0 : i32
    %c8_i32 = arith.constant 8 : i32
    %c0_i32_8 = arith.constant 0 : i32
    %5 = tpu.memref_slice %arg1[%c0_i32_7, %c8_i32, %c0_i32_8] : memref<2x12x128xf32, #tpu.memory_space<any>> -> memref<1x4x128xf32, #tpu.memory_space<any>>
    %6 = tpu.memref_slice %arg2[%c1_i32] : memref<4x!tpu.dma_semaphore, #tpu.memory_space<semaphore_mem>> -> memref<1x!tpu.dma_semaphore, #tpu.memory_space<semaphore_mem>>
    %7 = tpu.memref_squeeze %6 : memref<1x!tpu.dma_semaphore, #tpu.memory_space<semaphore_mem>> -> memref<!tpu.dma_semaphore, #tpu.memory_space<semaphore_mem>>
    tpu.enqueue_dma source(%4 : memref<1x4x128xf32, #tpu.memory_space<any>>) target(%5 : memref<1x4x128xf32, #tpu.memory_space<any>>) target_semaphore(%7 : memref<!tpu.dma_semaphore, #tpu.memory_space<semaphore_mem>>)
    %c2_i32_9 = arith.constant 2 : i32
    %c1_i32_10 = arith.constant 1 : i32
    %c2_i32_11 = arith.constant 2 : i32
    %c0_i32_12 = arith.constant 0 : i32
    %8 = tpu.memref_slice %arg0[%c1_i32_10, %c2_i32_11, %c0_i32_12] : memref<2x16x128xf32, #tpu.memory_space<any>> -> memref<1x8x128xf32, #tpu.memory_space<any>>
    %c1_i32_13 = arith.constant 1 : i32
    %c0_i32_14 = arith.constant 0 : i32
    %c0_i32_15 = arith.constant 0 : i32
    %9 = tpu.memref_slice %arg1[%c1_i32_13, %c0_i32_14, %c0_i32_15] : memref<2x12x128xf32, #tpu.memory_space<any>> -> memref<1x8x128xf32, #tpu.memory_space<any>>
    %10 = tpu.memref_slice %arg2[%c2_i32_9] : memref<4x!tpu.dma_semaphore, #tpu.memory_space<semaphore_mem>> -> memref<1x!tpu.dma_semaphore, #tpu.memory_space<semaphore_mem>>
    %11 = tpu.memref_squeeze %10 : memref<1x!tpu.dma_semaphore, #tpu.memory_space<semaphore_mem>> -> memref<!tpu.dma_semaphore, #tpu.memory_space<semaphore_mem>>
    tpu.enqueue_dma source(%8 : memref<1x8x128xf32, #tpu.memory_space<any>>) target(%9 : memref<1x8x128xf32, #tpu.memory_space<any>>) target_semaphore(%11 : memref<!tpu.dma_semaphore, #tpu.memory_space<semaphore_mem>>)
    %c3_i32 = arith.constant 3 : i32
    %c1_i32_16 = arith.constant 1 : i32
    %c10_i32_17 = arith.constant 10 : i32
    %c0_i32_18 = arith.constant 0 : i32
    %12 = tpu.memref_slice %arg0[%c1_i32_16, %c10_i32_17, %c0_i32_18] : memref<2x16x128xf32, #tpu.memory_space<any>> -> memref<1x4x128xf32, #tpu.memory_space<any>>
    %c1_i32_19 = arith.constant 1 : i32
    %c8_i32_20 = arith.constant 8 : i32
    %c0_i32_21 = arith.constant 0 : i32
    %13 = tpu.memref_slice %arg1[%c1_i32_19, %c8_i32_20, %c0_i32_21] : memref<2x12x128xf32, #tpu.memory_space<any>> -> memref<1x4x128xf32, #tpu.memory_space<any>>
    %14 = tpu.memref_slice %arg2[%c3_i32] : memref<4x!tpu.dma_semaphore, #tpu.memory_space<semaphore_mem>> -> memref<1x!tpu.dma_semaphore, #tpu.memory_space<semaphore_mem>>
    %15 = tpu.memref_squeeze %14 : memref<1x!tpu.dma_semaphore, #tpu.memory_space<semaphore_mem>> -> memref<!tpu.dma_semaphore, #tpu.memory_space<semaphore_mem>>
    tpu.enqueue_dma source(%12 : memref<1x4x128xf32, #tpu.memory_space<any>>) target(%13 : memref<1x4x128xf32, #tpu.memory_space<any>>) target_semaphore(%15 : memref<!tpu.dma_semaphore, #tpu.memory_space<semaphore_mem>>)
    %c0_i32_22 = arith.constant 0 : i32
    %c0_i32_23 = arith.constant 0 : i32
    %c2_i32_24 = arith.constant 2 : i32
    %c0_i32_25 = arith.constant 0 : i32
    %16 = tpu.memref_slice %arg0[%c0_i32_23, %c2_i32_24, %c0_i32_25] : memref<2x16x128xf32, #tpu.memory_space<any>> -> memref<1x8x128xf32, #tpu.memory_space<any>>
    %c0_i32_26 = arith.constant 0 : i32
    %c0_i32_27 = arith.constant 0 : i32
    %c0_i32_28 = arith.constant 0 : i32
    %17 = tpu.memref_slice %arg1[%c0_i32_26, %c0_i32_27, %c0_i32_28] : memref<2x12x128xf32, #tpu.memory_space<any>> -> memref<1x8x128xf32, #tpu.memory_space<any>>
    %18 = tpu.memref_slice %arg2[%c0_i32_22] : memref<4x!tpu.dma_semaphore, #tpu.memory_space<semaphore_mem>> -> memref<1x!tpu.dma_semaphore, #tpu.memory_space<semaphore_mem>>
    %19 = tpu.memref_squeeze %18 : memref<1x!tpu.dma_semaphore, #tpu.memory_space<semaphore_mem>> -> memref<!tpu.dma_semaphore, #tpu.memory_space<semaphore_mem>>
    tpu.wait_dma2 semaphore(%19 : memref<!tpu.dma_semaphore, #tpu.memory_space<semaphore_mem>>) src(%16 : memref<1x8x128xf32, #tpu.memory_space<any>>) dst(%17 : memref<1x8x128xf32, #tpu.memory_space<any>>)
    %c1_i32_29 = arith.constant 1 : i32
    %c0_i32_30 = arith.constant 0 : i32
    %c10_i32_31 = arith.constant 10 : i32
    %c0_i32_32 = arith.constant 0 : i32
    %20 = tpu.memref_slice %arg0[%c0_i32_30, %c10_i32_31, %c0_i32_32] : memref<2x16x128xf32, #tpu.memory_space<any>> -> memref<1x4x128xf32, #tpu.memory_space<any>>
    %c0_i32_33 = arith.constant 0 : i32
    %c8_i32_34 = arith.constant 8 : i32
    %c0_i32_35 = arith.constant 0 : i32
    %21 = tpu.memref_slice %arg1[%c0_i32_33, %c8_i32_34, %c0_i32_35] : memref<2x12x128xf32, #tpu.memory_space<any>> -> memref<1x4x128xf32, #tpu.memory_space<any>>
    %22 = tpu.memref_slice %arg2[%c1_i32_29] : memref<4x!tpu.dma_semaphore, #tpu.memory_space<semaphore_mem>> -> memref<1x!tpu.dma_semaphore, #tpu.memory_space<semaphore_mem>>
    %23 = tpu.memref_squeeze %22 : memref<1x!tpu.dma_semaphore, #tpu.memory_space<semaphore_mem>> -> memref<!tpu.dma_semaphore, #tpu.memory_space<semaphore_mem>>
    tpu.wait_dma2 semaphore(%23 : memref<!tpu.dma_semaphore, #tpu.memory_space<semaphore_mem>>) src(%20 : memref<1x4x128xf32, #tpu.memory_space<any>>) dst(%21 : memref<1x4x128xf32, #tpu.memory_space<any>>)
    %c2_i32_36 = arith.constant 2 : i32
    %c1_i32_37 = arith.constant 1 : i32
    %c2_i32_38 = arith.constant 2 : i32
    %c0_i32_39 = arith.constant 0 : i32
    %24 = tpu.memref_slice %arg0[%c1_i32_37, %c2_i32_38, %c0_i32_39] : memref<2x16x128xf32, #tpu.memory_space<any>> -> memref<1x8x128xf32, #tpu.memory_space<any>>
    %c1_i32_40 = arith.constant 1 : i32
    %c0_i32_41 = arith.constant 0 : i32
    %c0_i32_42 = arith.constant 0 : i32
    %25 = tpu.memref_slice %arg1[%c1_i32_40, %c0_i32_41, %c0_i32_42] : memref<2x12x128xf32, #tpu.memory_space<any>> -> memref<1x8x128xf32, #tpu.memory_space<any>>
    %26 = tpu.memref_slice %arg2[%c2_i32_36] : memref<4x!tpu.dma_semaphore, #tpu.memory_space<semaphore_mem>> -> memref<1x!tpu.dma_semaphore, #tpu.memory_space<semaphore_mem>>
    %27 = tpu.memref_squeeze %26 : memref<1x!tpu.dma_semaphore, #tpu.memory_space<semaphore_mem>> -> memref<!tpu.dma_semaphore, #tpu.memory_space<semaphore_mem>>
    tpu.wait_dma2 semaphore(%27 : memref<!tpu.dma_semaphore, #tpu.memory_space<semaphore_mem>>) src(%24 : memref<1x8x128xf32, #tpu.memory_space<any>>) dst(%25 : memref<1x8x128xf32, #tpu.memory_space<any>>)
    %c3_i32_43 = arith.constant 3 : i32
    %c1_i32_44 = arith.constant 1 : i32
    %c10_i32_45 = arith.constant 10 : i32
    %c0_i32_46 = arith.constant 0 : i32
    %28 = tpu.memref_slice %arg0[%c1_i32_44, %c10_i32_45, %c0_i32_46] : memref<2x16x128xf32, #tpu.memory_space<any>> -> memref<1x4x128xf32, #tpu.memory_space<any>>
    %c1_i32_47 = arith.constant 1 : i32
    %c8_i32_48 = arith.constant 8 : i32
    %c0_i32_49 = arith.constant 0 : i32
    %29 = tpu.memref_slice %arg1[%c1_i32_47, %c8_i32_48, %c0_i32_49] : memref<2x12x128xf32, #tpu.memory_space<any>> -> memref<1x4x128xf32, #tpu.memory_space<any>>
    %30 = tpu.memref_slice %arg2[%c3_i32_43] : memref<4x!tpu.dma_semaphore, #tpu.memory_space<semaphore_mem>> -> memref<1x!tpu.dma_semaphore, #tpu.memory_space<semaphore_mem>>
    %31 = tpu.memref_squeeze %30 : memref<1x!tpu.dma_semaphore, #tpu.memory_space<semaphore_mem>> -> memref<!tpu.dma_semaphore, #tpu.memory_space<semaphore_mem>>
    tpu.wait_dma2 semaphore(%31 : memref<!tpu.dma_semaphore, #tpu.memory_space<semaphore_mem>>) src(%28 : memref<1x4x128xf32, #tpu.memory_space<any>>) dst(%29 : memref<1x4x128xf32, #tpu.memory_space<any>>)
    return
  }
}

</mosaic_0001>

<llo_original>
// kernel: tpu_custom_call.1
$region0: #{tpu_custom_call.1}
  #allocation0 [shape = 'u32[]', space=smem, size = 0x4, offset = 0x4, fixed_abs, tag = 'smem constant byte address 0x4 - core index']
  #allocation1 [shape = 'u32[144,128]{1,0:T(1,128)}', space=vmem, size = 0x12000, scoped, tag = 'internal scratch']
  #allocation2 [shape = 's32[4]{0}', space=sflag, size = 0x10, scoped, tag = 'scratch operand']
  #allocation3 [shape = 's32[]', space=sflag, size = 0x4, offset = 0, fixed_abs, tag = 'sflag constant byte address 0x0 - dummy sync flag']
  #allocation4 [shape = 's32[]', space=sflag, size = 0x4, offset = 0, fixed_abs, tag = 'sflag constant byte address 0x0 - dummy sync flag']
  #allocation5 [shape = 'u32[]', space=smem, size = 0x4, offset = 0x44, fixed_abs, tag = 'smem constant byte address 0x44 - assertion arg 0']
  #allocation6 [shape = 'u32[]', space=smem, size = 0x4, offset = 0x48, fixed_abs, tag = 'smem constant byte address 0x48 - assertion arg 1']
  #allocation7 [shape = 's32[]', space=sflag, size = 0x4, offset = 0, fixed_abs, tag = 'sflag constant byte address 0x0 - dummy sync flag']
  #allocation8 [shape = 's32[]', space=sflag, size = 0x4, offset = 0, fixed_abs, tag = 'sflag constant byte address 0x0 - dummy sync flag']
  #allocation9 [shape = 's32[]', space=sflag, size = 0x4, offset = 0, fixed_abs, tag = 'sflag constant byte address 0x0 - dummy sync flag']
  #allocation10 [shape = 's32[]', space=sflag, size = 0x4, offset = 0, fixed_abs, tag = 'sflag constant byte address 0x0 - dummy sync flag']
  #allocation11 [shape = 's32[]', space=sflag, size = 0x4, offset = 0, fixed_abs, tag = 'sflag constant byte address 0x0 - dummy sync flag']
  #allocation12 [shape = 's32[]', space=sflag, size = 0x4, offset = 0, fixed_abs, tag = 'sflag constant byte address 0x0 - dummy sync flag']
  %s0 = inlined_call_operand.hbm [shape: f32[2,16,128], index: 0, kind: input, shape index: {}]
  %s1 = inlined_call_operand.vmem [shape: f32[2,12,128], index: 1, kind: output, shape index: {}]
  %s2 = sld [smem:[#allocation0]]
  $region18: #{tpu_custom_call.1} parent=0
    _
  %s4 = ssub.s32 1, %s2
  %s5 = scalar_select 0, %s4, %s2
  %s6 = scalar_lea.hbm %s0, 32
  // Predicated region
  $region2: #{tpu_custom_call.1} parent=0 // pred_check
    _
  $region3: #{tpu_custom_call.1} parent=0 // pred_check_branch
    %8 = sbr.rel target = $region5
  $region4: #{tpu_custom_call.1} parent=0 // pred_region
    %9 = sst [smem:[#allocation5]] [#allocation4]
    %10 = sst [smem:[#allocation6]] [#allocation3]
  $region5: #{tpu_custom_call.1} parent=0 // pred_fallthru
    _
  %12 = shalt.err (0)
  %s14 = sshll.u32 %s1, 4
  %s15 = int_to_ptr.vmem [resolvable:$true] %s14
  %17 = dma.hbm_to_vmem [thread:$0]  %s6, 128, %s15, [#allocation2]
  %s18 = scalar_lea.hbm %s0, 160
  %s19 = scalar_lea.vmem %s1, 8
  %s20 = scalar_lea.sflag [#allocation2], 1
  // Predicated region
  $region6: #{tpu_custom_call.1} parent=0 // pred_check
    _
  $region7: #{tpu_custom_call.1} parent=0 // pred_check_branch
    %22 = sbr.rel target = $region9
  $region8: #{tpu_custom_call.1} parent=0 // pred_region
    %23 = sst [smem:[#allocation5]] [#allocation8]
    %24 = sst [smem:[#allocation6]] [#allocation7]
  $region9: #{tpu_custom_call.1} parent=0 // pred_fallthru
    _
  %26 = shalt.err (0)
  %s28 = sshll.u32 %s19, 4
  %s29 = int_to_ptr.vmem [resolvable:$true] %s28
  %31 = dma.hbm_to_vmem [thread:$0]  %s18, 64, %s29, %s20
  %s32 = scalar_lea.hbm %s0, 288
  %s33 = scalar_lea.vmem %s1, 16
  %s34 = scalar_lea.sflag [#allocation2], 2
  // Predicated region
  $region10: #{tpu_custom_call.1} parent=0 // pred_check
    _
  $region11: #{tpu_custom_call.1} parent=0 // pred_check_branch
    %36 = sbr.rel target = $region13
  $region12: #{tpu_custom_call.1} parent=0 // pred_region
    %37 = sst [smem:[#allocation5]] [#allocation10]
    %38 = sst [smem:[#allocation6]] [#allocation9]
  $region13: #{tpu_custom_call.1} parent=0 // pred_fallthru
    _
  %40 = shalt.err (0)
  %s42 = sshll.u32 %s33, 4
  %s43 = int_to_ptr.vmem [resolvable:$true] %s42
  %45 = dma.hbm_to_vmem [thread:$0]  %s32, 128, %s43, %s34
  %s46 = scalar_lea.hbm %s0, 416
  %s47 = scalar_lea.vmem %s1, 24
  %s48 = scalar_lea.sflag [#allocation2], 3
  // Predicated region
  $region14: #{tpu_custom_call.1} parent=0 // pred_check
    _
  $region15: #{tpu_custom_call.1} parent=0 // pred_check_branch
    %50 = sbr.rel target = $region17
  $region16: #{tpu_custom_call.1} parent=0 // pred_region
    %51 = sst [smem:[#allocation5]] [#allocation12]
    %52 = sst [smem:[#allocation6]] [#allocation11]
  $region17: #{tpu_custom_call.1} parent=0 // pred_fallthru
    _
  %54 = shalt.err (0)
  %s56 = sshll.u32 %s47, 4
  %s57 = int_to_ptr.vmem [resolvable:$true] %s56
  %59 = dma.hbm_to_vmem [thread:$0]  %s46, 64, %s57, %s48
  %s60 = smul.u32 1, 8
  %s61 = smul.u32 %s60, 1
  %s62 = sshll.u32 %s61, 4
  %63 = dma.done [#allocation2], %s62
  %s64 = smul.u32 1, 4
  %s65 = smul.u32 %s64, 1
  %s66 = sshll.u32 %s65, 4
  %67 = dma.done %s20, %s66
  %s68 = sshll.u32 %s61, 4
  %69 = dma.done %s34, %s68
  %s70 = sshll.u32 %s65, 4
  %71 = dma.done %s48, %s70
  %72 = vsyncmov [#allocation2]
  %s73 = vpop.sfrf %72
  %p74 = scmp.eq.s32.totalorder %s73, 0
  %p75 = pneg %p74
  %77 = shalt.err (%p75)
  %s78 = scalar_lea.sflag [#allocation2], 1
  %79 = vsyncmov %s78
  %s80 = vpop.sfrf %79
  %p81 = scmp.eq.s32.totalorder %s80, 0
  %p82 = pneg %p81
  %84 = shalt.err (%p82)
  %s85 = scalar_lea.sflag [#allocation2], 2
  %86 = vsyncmov %s85
  %s87 = vpop.sfrf %86
  %p88 = scmp.eq.s32.totalorder %s87, 0
  %p89 = pneg %p88
  %91 = shalt.err (%p89)
  %s92 = scalar_lea.sflag [#allocation2], 3
  %93 = vsyncmov %s92
  %s94 = vpop.sfrf %93
  %p95 = scmp.eq.s32.totalorder %s94, 0
  %p96 = pneg %p95
  %98 = shalt.err (%p96)

</llo_original>
